<compile_context>
chip_gen: v7x
topology: tpu7x:2x2x1
jax: 0.10.0
libtpu: 0.0.40
codegen_flags: <defaults>
</compile_context>

<pallas_src>
import math
import functools

import numpy as np
import jax
import jax.numpy as jnp
from jax.experimental import pallas as pl
from jax.experimental.pallas import tpu as pltpu


def make_pe(d_model: int, max_len: int = 20) -> jnp.ndarray:
    """Sinusoidal positional-encoding table, shape (max_len, d_model), float32."""
    position = np.arange(max_len, dtype=np.float32)[:, None]                    # (L, 1)
    div_term = np.exp(np.arange(0, d_model, 2, dtype=np.float32)
                      * (-math.log(10000.0) / d_model))                         # (d/2,)
    pe = np.zeros((max_len, d_model), dtype=np.float32)
    pe[:, 0::2] = np.sin(position * div_term)
    pe[:, 1::2] = np.cos(position * div_term)
    return jnp.asarray(pe)


# --------------------------------------------------------------------- kernels ----

def _add_pe_kernel(x_ref, pe_ref, o_ref):
    # Eval mode / p == 0: dropout is the identity.  pe_ref is (1, H*d) and broadcasts
    # over the sublane (row) dimension of the (rows, H*d) tile.
    o_ref[...] = (x_ref[...] + pe_ref[...]).astype(o_ref.dtype)


def _add_pe_dropout_bits_kernel(x_ref, pe_ref, bits_ref, o_ref, *, threshold, scale):
    # Portable dropout path: uint32 bits supplied by the wrapper (works in interpret mode).
    y = x_ref[...] + pe_ref[...]
    keep = bits_ref[...] >= jnp.uint32(threshold)        # integer-threshold compare
    o_ref[...] = jnp.where(keep, y * scale, 0.0).astype(o_ref.dtype)


def _add_pe_dropout_prng_kernel(seed_ref, x_ref, pe_ref, o_ref, *, threshold, scale):
    # TPU hardware-PRNG dropout path: one seed + one bulk bits draw per (large) tile,
    # so the scalar slot stays idle and no mask bytes cross HBM.
    y = x_ref[...] + pe_ref[...]
    pltpu.prng_seed(seed_ref[0] + pl.program_id(0))      # independent mask per tile
    bits = pltpu.bitcast(pltpu.prng_random_bits(y.shape), jnp.uint32)
    keep = bits >= jnp.uint32(threshold)
    o_ref[...] = jnp.where(keep, y * scale, 0.0).astype(o_ref.dtype)


# --------------------------------------------------------------------- wrapper ----

_TILE_BYTES = 4 * 1024 * 1024   # per-input tile budget; double-buffered in+out(+mask)
                                # stays far below v7x's 32 MiB scoped-VMEM default.


def _row_block(B: int, row_bytes: int) -> int:
    rows_fit = max(1, _TILE_BYTES // max(1, row_bytes))
    if rows_fit >= B:
        return B                               # full-extent block (always legal)
    return max(8, (rows_fit // 8) * 8)         # sublane-aligned when actually tiling


def time_encoding(x, pe, start_t: int = 0, *, dropout_p: float = 0.1,
                  training: bool = False, seed: int = 0):
    """Pallas port of TimeEncoding.forward: dropout(x + pe[start_t:start_t+H, :]).

    x: (B, H, d).  pe: (max_len, d).  Returns (B, H, d), same dtype as x.
    """
    B, H, d = x.shape
    Hd = H * d

    # Glue (tiny): slice the pe window and flatten everything to a lane-dense 2-D slab.
    # NOTE: dynamic_slice clamps start_t; matches torch semantics for in-range start_t.
    pe_win = jax.lax.dynamic_slice(pe, (start_t, 0), (H, d))
    pe_win = pe_win.reshape(1, Hd).astype(x.dtype)
    x2 = x.reshape(B, Hd)

    block_rows = _row_block(B, Hd * x.dtype.itemsize)
    grid = (pl.cdiv(B, block_rows),)
    row_spec = pl.BlockSpec((block_rows, Hd), lambda i: (i, 0))
    pe_spec = pl.BlockSpec((1, Hd), lambda i: (0, 0))   # constant block index -> DMA'd once
    cparams = pltpu.CompilerParams(dimension_semantics=("parallel",))
    out_shape = jax.ShapeDtypeStruct((B, Hd), x.dtype)

    if not training or dropout_p <= 0.0:
        out = pl.pallas_call(
            _add_pe_kernel,
            out_shape=out_shape,
            grid=grid,
            in_specs=[row_spec, pe_spec],
            out_specs=row_spec,
            compiler_params=cparams,
        )(x2, pe_win)
        return out.reshape(B, H, d)

    # Inverted dropout: keep w.p. 1-p, scale kept values by 1/(1-p).
    threshold = min(int(round(dropout_p * (1 << 32))), (1 << 32) - 1)
    scale = 1.0 / (1.0 - dropout_p)

    if jax.default_backend() == "tpu":
        # In-kernel hardware PRNG: zero extra HBM traffic for the mask.
        seed_arr = jnp.array([seed], dtype=jnp.int32)
        kernel = functools.partial(_add_pe_dropout_prng_kernel,
                                   threshold=threshold, scale=scale)
        out = pl.pallas_call(
            kernel,
            out_shape=out_shape,
            grid_spec=pltpu.PrefetchScalarGridSpec(
                num_scalar_prefetch=1,                       # seed lands in SMEM
                grid=grid,
                in_specs=[pl.BlockSpec((block_rows, Hd), lambda i, s: (i, 0)),
                          pl.BlockSpec((1, Hd), lambda i, s: (0, 0))],
                out_specs=pl.BlockSpec((block_rows, Hd), lambda i, s: (i, 0)),
            ),
            compiler_params=cparams,
        )(seed_arr, x2, pe_win)
    else:
        # TODO(synk): pltpu.prng_* has no CPU/interpret lowering; off-TPU we stream
        # host-generated uint32 bits through HBM instead (one extra input-sized read).
        bits = jax.random.bits(jax.random.PRNGKey(seed), (B, Hd), dtype=jnp.uint32)
        kernel = functools.partial(_add_pe_dropout_bits_kernel,
                                   threshold=threshold, scale=scale)
        out = pl.pallas_call(
            kernel,
            out_shape=out_shape,
            grid=grid,
            in_specs=[row_spec, pe_spec, row_spec],
            out_specs=row_spec,
            compiler_params=cparams,
        )(x2, pe_win, bits)
    return out.reshape(B, H, d)


if __name__ == "__main__":
    B, H, d_model, max_len = 2, 8, 32, 20
    start_t = 3
    dropout_p = 0.1

    key = jax.random.PRNGKey(0)
    x = jax.random.normal(key, (B, H, d_model), dtype=jnp.float32)
    pe = make_pe(d_model, max_len)

    ref = np.asarray(x) + np.asarray(pe)[start_t:start_t + H, :][None, :, :]

    # Eval mode (dropout = identity): must match the reference.
    out_eval = jax.block_until_ready(
        time_encoding(x, pe, start_t, dropout_p=dropout_p, training=False))
    np.testing.assert_allclose(np.asarray(out_eval), ref, rtol=1e-6, atol=1e-6)

    # Train mode (dropout active): kept elements == ref / (1 - p), dropped == 0.
    out_train = jax.block_until_ready(
        time_encoding(x, pe, start_t, dropout_p=dropout_p, training=True, seed=42))
    ot = np.asarray(out_train)
    kept = ot != 0.0
    np.testing.assert_allclose(ot[kept], (ref / (1.0 - dropout_p))[kept],
                               rtol=1e-5, atol=1e-5)

    print("KERNEL_OK")
</pallas_src>

<mosaic_0001>
module attributes {stable_mosaic.version = 11 : i64} {
  func.func @_add_pe_kernel(%arg0: i32, %arg1: memref<2x256xf32, #tpu.memory_space<vmem>>, %arg2: memref<1x256xf32, #tpu.memory_space<vmem>>, %arg3: memref<2x256xf32, #tpu.memory_space<vmem>>) attributes {dimension_semantics = [#tpu.dimension_semantics<parallel>], iteration_bounds = array<i64: 1>, scalar_prefetch = 0 : i64, scratch_operands = 0 : i64, tpu.core_type = #tpu.core_type<tc>, window_params = [{transform_indices = @transform_0, window_bounds = array<i64: 2, 256>}, {pipeline_mode = #tpu.pipeline_mode<synchronous>, transform_indices = @transform_1, window_bounds = array<i64: 1, 256>}, {transform_indices = @transform_2, window_bounds = array<i64: 2, 256>}]} {
    %c0 = arith.constant 0 : index
    %c0_0 = arith.constant 0 : index
    %0 = vector.load %arg1[%c0, %c0_0] : memref<2x256xf32, #tpu.memory_space<vmem>>, vector<2x256xf32>
    %c0_1 = arith.constant 0 : index
    %c0_2 = arith.constant 0 : index
    %1 = vector.load %arg2[%c0_1, %c0_2] : memref<1x256xf32, #tpu.memory_space<vmem>>, vector<1x256xf32>
    %2 = vector.broadcast %1 : vector<1x256xf32> to vector<2x256xf32>
    %3 = arith.addf %0, %2 : vector<2x256xf32>
    %c0_3 = arith.constant 0 : index
    %c0_4 = arith.constant 0 : index
    %4 = vector.load %arg3[%c0_3, %c0_4] : memref<2x256xf32, #tpu.memory_space<vmem>>, vector<2x256xf32>
    tpu.vector_store %arg3[%c0_3, %c0_4], %3 {strides = array<i32>} : memref<2x256xf32, #tpu.memory_space<vmem>>, vector<2x256xf32>,
    return
  }
  func.func @transform_0(%arg0: i32) -> (i32, i32) {
    %c0_i32 = arith.constant 0 : i32
    %c0_i32_0 = arith.constant 0 : i32
    return %arg0, %c0_i32 : i32, i32
  }
  func.func @transform_1(%arg0: i32) -> (i32, i32) {
    %c0_i32 = arith.constant 0 : i32
    %c0_i32_0 = arith.constant 0 : i32
    %c0_i32_1 = arith.constant 0 : i32
    return %c0_i32, %c0_i32_0 : i32, i32
  }
  func.func @transform_2(%arg0: i32) -> (i32, i32) {
    %c0_i32 = arith.constant 0 : i32
    %c0_i32_0 = arith.constant 0 : i32
    return %arg0, %c0_i32 : i32, i32
  }
}

</mosaic_0001>

<llo_original>
// kernel: tpu_custom_call.1
$region0: #{tpu_custom_call.1}
  #allocation0 [shape = 'u32[]', space=smem, size = 0x4, offset = 0x4, fixed_abs, tag = 'smem constant byte address 0x4 - core index']
  #allocation1 [shape = 'u32[144,128]{1,0:T(1,128)}', space=vmem, size = 0x12000, scoped, tag = 'internal scratch']
  %s0 = inlined_call_operand.hbm [shape: f32[2,256], index: 0, kind: input, shape index: {}]
  %s1 = inlined_call_operand.vmem [shape: f32[1,256], index: 1, kind: input, shape index: {}]
  %s2 = inlined_call_operand.hbm [shape: f32[2,256], index: 2, kind: output, shape index: {}]
  %s3 = sld [smem:[#allocation0]]
  $region22: #{tpu_custom_call.1} parent=0
    _
  %s5 = ssub.s32 1, %s3
  %s6 = scalar_select 0, %s5, %s3
  $region1: #{tpu_custom_call.1} parent=0
    #allocation2 [shape = 'u8[2048]{0}', space=vmem, size = 0x800, scoped, tag = 'input window, operand 0, single buffered']
    #allocation3 [shape = 's32[1]{0}', space=sflag, size = 0x4, scoped, tag = 'scoped memory for tpu_custom_call.1']
    #allocation4 [shape = 's32[1]{0}', space=sflag, size = 0x4, scoped, tag = 'scoped memory for tpu_custom_call.1']
    #allocation5 [shape = 'u8[2048]{0}', space=vmem, size = 0x800, scoped, tag = 'output window, operand 0, single buffered']
    %7 = vsyncpa [#allocation3], 0
    %8 = vsyncpa [#allocation4], 0
    // Predicated region
    $region2: #{tpu_custom_call.1} parent=1 // pred_check
      _
    $region3: #{tpu_custom_call.1} parent=1 // pred_check_branch
      %10 = sbr.rel (0) target = $region5
    $region4: #{tpu_custom_call.1} parent=1 // pred_region
      %s12 = ssub.s32 64, 64
      %13 = vsyncadd [#allocation3], %s12
      %s15 = sshll.u32 [#allocation2], 4
      %s16 = int_to_ptr.vmem [resolvable:$true] %s15
      %18 = dma.hbm_to_vmem [thread:$0]  %s0, 64, %s16, [#allocation3]
    $region5: #{tpu_custom_call.1} parent=1 // pred_fallthru
      _
    // Predicated region
    $region6: #{tpu_custom_call.1} parent=1 // pred_check
      _
    $region7: #{tpu_custom_call.1} parent=1 // pred_check_branch
      %20 = sbr.rel (0) target = $region9
    $region8: #{tpu_custom_call.1} parent=1 // pred_region
      _
    $region9: #{tpu_custom_call.1} parent=1 // pred_fallthru
      _
    // Predicated region
    $region10: #{tpu_custom_call.1} parent=1 // pred_check
      _
    $region11: #{tpu_custom_call.1} parent=1 // pred_check_branch
      %22 = sbr.rel (0) target = $region13
    $region12: #{tpu_custom_call.1} parent=1 // pred_region
      %23 = dma.done [#allocation3], 64
    $region13: #{tpu_custom_call.1} parent=1 // pred_fallthru
      _
    %v24 = vld [vmem:[#allocation2] sm:$0xf]
    %v25 = vld [vmem:[%s1] sm:$0x3]
    %v27 = vlaneseq
    %v28 = vshrl.u32 %v27, 7
    %v29 = vsub.s32 0, %v28
    %v30 = vrot.slane %v25, %v29
    %v31 = vlaneseq
    %v32 = vshrl.u32 %v31, 7
    %v33 = vsub.s32 1, %v32
    %v34 = vrot.slane %v25, %v33
    %v35 = vcombine.low %v30, %v34
    %v37 = vunpack.c.l.s4 1983009808
    %v38 = vunpack.c.0.s8 %v37
    %v39 = vlaneseq
    %v40 = vshrl.u32 %v39, 7
    %v41 = vsub.s32 %v38, %v40
    %v42 = vrot.slane %v35, %v41
    %v44 = vadd.f32 %v24, %v42
    %45 = vst [vmem:[#allocation5] sm:$0xf] %v44
    // Predicated region
    $region14: #{tpu_custom_call.1} parent=1 // pred_check
      _
    $region15: #{tpu_custom_call.1} parent=1 // pred_check_branch
      %47 = sbr.rel (0) target = $region17
    $region16: #{tpu_custom_call.1} parent=1 // pred_region
      %s49 = ssub.s32 64, 64
      %50 = vsyncadd [#allocation4], %s49
      %s52 = sshll.u32 [#allocation5], 4
      %s53 = int_to_ptr.vmem [resolvable:$true] %s52
      %55 = dma.vmem_to_hbm [thread:$0]  %s53, 64, %s2, [#allocation4]
    $region17: #{tpu_custom_call.1} parent=1 // pred_fallthru
      _
    // Predicated region
    $region18: #{tpu_custom_call.1} parent=1 // pred_check
      _
    $region19: #{tpu_custom_call.1} parent=1 // pred_check_branch
      %57 = sbr.rel (0) target = $region21
    $region20: #{tpu_custom_call.1} parent=1 // pred_region
      %58 = dma.done [#allocation4], 64
    $region21: #{tpu_custom_call.1} parent=1 // pred_fallthru
      _
    %59 = vsyncpa [#allocation3], 1
    %60 = vsyncpa [#allocation4], 1

</llo_original>
